<compile_context>
chip_gen: v7x
topology: tpu7x:2x2x1
jax: 0.10.0
libtpu: 0.0.40
codegen_flags: <defaults>
</compile_context>

<pallas_src>
import functools

import jax
import jax.numpy as jnp
from jax.experimental import pallas as pl
from jax.experimental.pallas import tpu as pltpu


# ----------------------------------------------------------------------------
# Kernel
# ----------------------------------------------------------------------------
def _head_kernel(h_ref, w_ref, b_ref, o_ref, sum_ref, max_ref, *,
                 seq_len: int, mask_seq: bool, use_sigmoid: bool):
    """Streaming pooling + classifier + softmax/sigmoid head.

    h_ref:   [TB, TS, H] tile of last_hidden_state (f32 or bf16)
    w_ref:   [2, H, C]   classifier weight ({mean, max} halves on leading dim)
    b_ref:   [1, C]      classifier bias
    o_ref:   [TB, C]     output probabilities (written on last seq step)
    sum_ref: [TB, H]     f32 running sum   (VMEM scratch)
    max_ref: [TB, H]     f32 running max   (VMEM scratch)
    """
    s_idx = pl.program_id(1)
    ts = h_ref.shape[1]

    @pl.when(s_idx == 0)
    def _init():
        sum_ref[...] = jnp.zeros_like(sum_ref)
        max_ref[...] = jnp.full_like(max_ref, -jnp.inf)

    # Sum path: accumulate in f32 without materializing an f32 copy of the
    # whole tile (the cast fuses into the reduction).  Zero-padded rows (from
    # wrapper-side padding) contribute nothing to the sum.
    sum_ref[...] += jnp.sum(h_ref[...], axis=1, dtype=jnp.float32)

    # Max path: reduce in the input dtype (exact for max), widen only the
    # [TB, H] result.  Padded sequence rows are masked to -inf.
    x = h_ref[...]
    if mask_seq:
        row = jax.lax.broadcasted_iota(jnp.int32, (1, ts, 1), 1) + s_idx * ts
        x = jnp.where(row < seq_len, x, jnp.asarray(-jnp.inf, dtype=x.dtype))
    max_ref[...] = jnp.maximum(max_ref[...],
                               jnp.max(x, axis=1).astype(jnp.float32))

    @pl.when(s_idx == pl.num_programs(1) - 1)
    def _finalize():
        mean_pool = sum_ref[...] * (1.0 / seq_len)            # [TB, H]
        max_pool = max_ref[...]                               # [TB, H]
        # Dropout is inference-mode identity (nn.Dropout in eval): no-op.
        # cat([mean, max], 1) @ W + b == mean @ W[:H] + max @ W[H:] + b
        logits = (
            jnp.dot(mean_pool, w_ref[0].astype(jnp.float32),
                    preferred_element_type=jnp.float32)
            + jnp.dot(max_pool, w_ref[1].astype(jnp.float32),
                      preferred_element_type=jnp.float32)
            + b_ref[...].astype(jnp.float32)                  # [1, C] broadcasts
        )                                                     # [TB, C]
        if use_sigmoid:
            out = jax.nn.sigmoid(logits)                      # nn.Sigmoid
        else:                                                 # nn.Softmax(dim=1)
            m = jnp.max(logits, axis=1, keepdims=True)
            e = jnp.exp(logits - m)
            # Exact denominator: the epilogue is off the critical path, so the
            # approx EUP reciprocal would buy nothing and cost normalization.
            out = e / jnp.sum(e, axis=1, keepdims=True)
        o_ref[...] = out.astype(o_ref.dtype)


# ----------------------------------------------------------------------------
# Tiling plan
# ----------------------------------------------------------------------------
def _round_up(n: int, m: int) -> int:
    return ((n + m - 1) // m) * m


def _vmem_capacity_bytes() -> int:
    """Physical VMEM of the current chip; conservative fallback (v7x = 64 MiB)."""
    try:
        cap = getattr(pltpu.get_tpu_info(), "vmem_capacity_bytes", None)
        if cap:
            return int(cap)
    except Exception:
        pass
    return 64 << 20


def _plan_tiles(B: int, S: int, H: int, C: int, itemsize: int,
                sublane_mult: int, seq_tile=None):
    """Pick (TB, TS, padded_B, padded_S, vmem_limit_bytes).

    TB is kept small (full B when B <= 8, else 8) so the batch grid axis has
    >= 2 programs whenever possible (v7x megacore) and the byte budget goes
    into TS (long contiguous DMA segments).  TS is sized from the chip's real
    VMEM capacity.
    """
    TB = B if B <= 8 else 8

    cap = _vmem_capacity_bytes()
    budget = int(cap * 0.60)  # ~77 MiB on v5e/v6e (128 MiB), ~38 MiB on v7x (64 MiB)

    # VMEM-resident fixed cost: double-buffered weight/bias/output + scratch.
    fixed = 2 * ((2 * H * C) + C + (TB * C)) * 4 + 2 * TB * H * 4

    min_input = 2 * TB * sublane_mult * H * itemsize
    input_budget = max(budget - fixed - (2 << 20), min_input)

    if seq_tile is not None:
        assert seq_tile % sublane_mult == 0, (
            f"seq_tile must be a multiple of {sublane_mult}")
        TS = int(seq_tile)
    else:
        max_ts = input_budget // (2 * TB * H * itemsize)
        max_ts = max(sublane_mult, (max_ts // sublane_mult) * sublane_mult)
        TS = min(int(max_ts), _round_up(S, sublane_mult))

    padded_S = _round_up(S, TS)
    padded_B = _round_up(B, TB)

    vmem_limit = 2 * TB * TS * H * itemsize + fixed + (4 << 20)
    vmem_limit = int(min(cap, max(vmem_limit, 32 << 20)))
    return TB, TS, padded_B, padded_S, vmem_limit


# ----------------------------------------------------------------------------
# Wrapper
# ----------------------------------------------------------------------------
def transformer_model_head(last_hidden_state, weight, bias, *,
                           use_sigmoid: bool = False,
                           cast_to_bf16: bool = False,
                           seq_tile=None):
    """Runs the pooling + classifier head as one Pallas kernel.

    last_hidden_state: [B, S, H] float32 or bfloat16 (backbone output)
    weight:            [2H, C]   input-major (i.e. torch `classifier.weight.T`)
    bias:              [C]
    use_sigmoid:       True for the task3 branch (nn.Sigmoid), else softmax.
    cast_to_bf16:      optionally halve HBM traffic by feeding bf16 activations
                       (accumulation stays f32); off by default to preserve
                       exact f32 semantics.
    returns:           [B, C] float32 probabilities
    """
    if cast_to_bf16 and last_hidden_state.dtype == jnp.float32:
        last_hidden_state = last_hidden_state.astype(jnp.bfloat16)

    B, S, H = last_hidden_state.shape
    twoH, C = weight.shape
    assert twoH == 2 * H, "weight must be [2*H, C] (torch weight.T)"

    itemsize = jnp.dtype(last_hidden_state.dtype).itemsize
    # dtype-matched sublane packing: 8 rows/f32, 16 rows/bf16, 32 rows/int8.
    sublane_mult = max(8, 32 // itemsize)

    TB, TS, padded_B, padded_S, vmem_limit = _plan_tiles(
        B, S, H, C, itemsize, sublane_mult, seq_tile=seq_tile)

    # Zero-pad instead of ever letting a tile exceed the VMEM budget.  Zero
    # rows are harmless for the sum; padded sequence rows are masked for max.
    h = last_hidden_state
    if padded_B != B or padded_S != S:
        h = jnp.pad(h, ((0, padded_B - B), (0, padded_S - S), (0, 0)))
    mask_seq = padded_S != S

    w3 = weight.reshape(2, H, C)        # [mean-half, max-half] on leading dim
    b2 = bias.reshape(1, C)

    grid = (padded_B // TB, padded_S // TS)

    kernel = functools.partial(_head_kernel, seq_len=S, mask_seq=mask_seq,
                               use_sigmoid=use_sigmoid)

    out = pl.pallas_call(
        kernel,
        out_shape=jax.ShapeDtypeStruct((padded_B, C), jnp.float32),
        grid_spec=pltpu.PrefetchScalarGridSpec(
            num_scalar_prefetch=0,
            grid=grid,
            in_specs=[
                # Streamed activation tile.
                pl.BlockSpec((TB, TS, H), lambda b, s: (b, s, 0)),
                # Constant index_maps: weight/bias stay VMEM-resident.
                pl.BlockSpec((2, H, C), lambda b, s: (0, 0, 0)),
                pl.BlockSpec((1, C), lambda b, s: (0, 0)),
            ],
            out_specs=pl.BlockSpec((TB, C), lambda b, s: (b, 0)),
            scratch_shapes=[
                pltpu.VMEM((TB, H), jnp.float32),   # running sum
                pltpu.VMEM((TB, H), jnp.float32),   # running max
            ],
        ),
        compiler_params=pltpu.CompilerParams(
            # Batch axis parallel (sharded across v7x's 2 TCs; harmless on
            # v5e/v6e's single TC); sequence reduction axis last and arbitrary.
            dimension_semantics=("parallel", "arbitrary"),
            vmem_limit_bytes=vmem_limit,
        ),
    )(h, w3, b2)

    return out[:B] if padded_B != B else out


# ----------------------------------------------------------------------------
# Plain-JAX reference (mirrors the torch forward in eval mode)
# ----------------------------------------------------------------------------
def _reference(last_hidden_state, weight, bias, use_sigmoid=False):
    x = last_hidden_state.astype(jnp.float32)
    mean_pool = jnp.mean(x, axis=1)
    max_pool = jnp.max(x, axis=1)
    cat = jnp.concatenate([mean_pool, max_pool], axis=1)
    logits = cat @ weight + bias
    if use_sigmoid:
        return jax.nn.sigmoid(logits)
    return jax.nn.softmax(logits, axis=1)


# ----------------------------------------------------------------------------
# Demo / correctness checks
# ----------------------------------------------------------------------------
if __name__ == "__main__":
    # Small shapes consistent with the module forward:
    # batch=2, seq=16, hidden=32, number_of_classes=4.
    B, S, H, C = 2, 16, 32, 4

    key = jax.random.PRNGKey(0)
    k_h, k_w, k_b = jax.random.split(key, 3)

    # Synthetic "transformer" output (last_hidden_state).
    last_hidden_state = jax.random.normal(k_h, (B, S, H), dtype=jnp.float32)

    # Deterministic classifier params, torch.nn.Linear-style init:
    # U(-1/sqrt(fan_in), 1/sqrt(fan_in)) with fan_in = 2*H.
    bound = 1.0 / (2 * H) ** 0.5
    weight = jax.random.uniform(k_w, (2 * H, C), jnp.float32, -bound, bound)
    bias = jax.random.uniform(k_b, (C,), jnp.float32, -bound, bound)

    ref = _reference(last_hidden_state, weight, bias, use_sigmoid=False)

    # (1) Auto-tiled softmax branch.
    out = jax.block_until_ready(
        transformer_model_head(last_hidden_state, weight, bias))
    assert out.shape == (B, C)
    assert jnp.allclose(out, ref, atol=1e-5, rtol=1e-5), (out, ref)
    assert jnp.allclose(jnp.sum(out, axis=1), jnp.ones((B,)), atol=1e-5)

    # (2) Multi-step sequence reduction (seq_tile=8 -> seq grid axis = 2 steps).
    out2 = jax.block_until_ready(
        transformer_model_head(last_hidden_state, weight, bias, seq_tile=8))
    assert jnp.allclose(out2, ref, atol=1e-5, rtol=1e-5), (out2, ref)

    # (3) Ragged sequence length (S=13): wrapper pads to 16 and masks the
    #     padded rows out of the max; mean divides by the true length.
    h13 = last_hidden_state[:, :13, :]
    ref13 = _reference(h13, weight, bias, use_sigmoid=False)
    out13 = jax.block_until_ready(
        transformer_model_head(h13, weight, bias, seq_tile=8))
    assert jnp.allclose(out13, ref13, atol=1e-5, rtol=1e-5), (out13, ref13)

    # (4) Sigmoid branch (task3).
    ref_sig = _reference(last_hidden_state, weight, bias, use_sigmoid=True)
    out_sig = jax.block_until_ready(
        transformer_model_head(last_hidden_state, weight, bias, use_sigmoid=True))
    assert jnp.allclose(out_sig, ref_sig, atol=1e-5, rtol=1e-5), (out_sig, ref_sig)

    # (5) bf16 activations (halved HBM bytes), f32 accumulation inside.
    out_bf16 = jax.block_until_ready(
        transformer_model_head(last_hidden_state.astype(jnp.bfloat16),
                               weight, bias))
    assert jnp.allclose(out_bf16, ref, atol=5e-2, rtol=5e-2), (out_bf16, ref)

    print("KERNEL_OK")
</pallas_src>

<mosaic_0001>
module attributes {stable_mosaic.version = 11 : i64} {
  func.func @_head_kernel(%arg0: i32, %arg1: i32, %arg2: memref<2x16x32xf32, #tpu.memory_space<vmem>>, %arg3: memref<2x32x4xf32, #tpu.memory_space<vmem>>, %arg4: memref<1x4xf32, #tpu.memory_space<vmem>>, %arg5: memref<2x4xf32, #tpu.memory_space<vmem>>, %arg6: memref<2x32xf32, #tpu.memory_space<vmem>>, %arg7: memref<2x32xf32, #tpu.memory_space<vmem>>) attributes {dimension_semantics = [#tpu.dimension_semantics<parallel>, #tpu.dimension_semantics<arbitrary>], iteration_bounds = array<i64: 1, 1>, scalar_prefetch = 0 : i64, scratch_operands = 2 : i64, tpu.core_type = #tpu.core_type<tc>, window_params = [{transform_indices = @transform_0, window_bounds = array<i64: 2, 16, 32>}, {pipeline_mode = #tpu.pipeline_mode<synchronous>, transform_indices = @transform_1, window_bounds = array<i64: 2, 32, 4>}, {pipeline_mode = #tpu.pipeline_mode<synchronous>, transform_indices = @transform_2, window_bounds = array<i64: 1, 4>}, {transform_indices = @transform_3, window_bounds = array<i64: 2, 4>}]} {
    %c0_i32 = arith.constant 0 : i32
    %0 = arith.cmpi eq, %arg1, %c0_i32 : i32
    %1 = arith.extui %0 : i1 to i32
    %c0_i32_0 = arith.constant 0 : i32
    %2 = arith.cmpi ne, %1, %c0_i32_0 : i32
    scf.if %2 {
      %cst_17 = arith.constant 0.000000e+00 : f32
      %16 = vector.broadcast %cst_17 : f32 to vector<2x32xf32>
      %c0_18 = arith.constant 0 : index
      %c0_19 = arith.constant 0 : index
      %17 = vector.load %arg6[%c0_18, %c0_19] : memref<2x32xf32, #tpu.memory_space<vmem>>, vector<2x32xf32>
      tpu.vector_store %arg6[%c0_18, %c0_19], %16 {strides = array<i32>} : memref<2x32xf32, #tpu.memory_space<vmem>>, vector<2x32xf32>,
      %cst_20 = arith.constant 0xFF800000 : f32
      %18 = vector.broadcast %cst_20 : f32 to vector<2x32xf32>
      %c0_21 = arith.constant 0 : index
      %c0_22 = arith.constant 0 : index
      %19 = vector.load %arg7[%c0_21, %c0_22] : memref<2x32xf32, #tpu.memory_space<vmem>>, vector<2x32xf32>
      tpu.vector_store %arg7[%c0_21, %c0_22], %18 {strides = array<i32>} : memref<2x32xf32, #tpu.memory_space<vmem>>, vector<2x32xf32>,
    } else {
    }
    %c0 = arith.constant 0 : index
    %c0_1 = arith.constant 0 : index
    %3 = vector.load %arg6[%c0, %c0_1] : memref<2x32xf32, #tpu.memory_space<vmem>>, vector<2x32xf32>
    %c0_2 = arith.constant 0 : index
    %c0_3 = arith.constant 0 : index
    %c0_4 = arith.constant 0 : index
    %4 = vector.load %arg2[%c0_2, %c0_3, %c0_4] : memref<2x16x32xf32, #tpu.memory_space<vmem>>, vector<2x16x32xf32>
    %cst = arith.constant dense<0.000000e+00> : vector<2x32xf32>
    %5 = vector.multi_reduction <add>, %4, %cst [1] : vector<2x16x32xf32> to vector<2x32xf32>
    %6 = arith.addf %3, %5 : vector<2x32xf32>
    %c0_5 = arith.constant 0 : index
    %c0_6 = arith.constant 0 : index
    %7 = vector.load %arg6[%c0_5, %c0_6] : memref<2x32xf32, #tpu.memory_space<vmem>>, vector<2x32xf32>
    tpu.vector_store %arg6[%c0_5, %c0_6], %6 {strides = array<i32>} : memref<2x32xf32, #tpu.memory_space<vmem>>, vector<2x32xf32>,
    %c0_7 = arith.constant 0 : index
    %c0_8 = arith.constant 0 : index
    %c0_9 = arith.constant 0 : index
    %8 = vector.load %arg2[%c0_7, %c0_8, %c0_9] : memref<2x16x32xf32, #tpu.memory_space<vmem>>, vector<2x16x32xf32>
    %c0_10 = arith.constant 0 : index
    %c0_11 = arith.constant 0 : index
    %9 = vector.load %arg7[%c0_10, %c0_11] : memref<2x32xf32, #tpu.memory_space<vmem>>, vector<2x32xf32>
    %cst_12 = arith.constant dense<0xFF800000> : vector<2x32xf32>
    %10 = vector.multi_reduction <maximumf>, %8, %cst_12 [1] : vector<2x16x32xf32> to vector<2x32xf32>
    %11 = arith.maximumf %9, %10 : vector<2x32xf32>
    %c0_13 = arith.constant 0 : index
    %c0_14 = arith.constant 0 : index
    %12 = vector.load %arg7[%c0_13, %c0_14] : memref<2x32xf32, #tpu.memory_space<vmem>>, vector<2x32xf32>
    tpu.vector_store %arg7[%c0_13, %c0_14], %11 {strides = array<i32>} : memref<2x32xf32, #tpu.memory_space<vmem>>, vector<2x32xf32>,
    %c0_i32_15 = arith.constant 0 : i32
    %13 = arith.cmpi eq, %arg1, %c0_i32_15 : i32
    %14 = arith.extui %13 : i1 to i32
    %c0_i32_16 = arith.constant 0 : i32
    %15 = arith.cmpi ne, %14, %c0_i32_16 : i32
    scf.if %15 {
      %c0_17 = arith.constant 0 : index
      %c0_18 = arith.constant 0 : index
      %16 = vector.load %arg6[%c0_17, %c0_18] : memref<2x32xf32, #tpu.memory_space<vmem>>, vector<2x32xf32>
      %cst_19 = arith.constant 6.250000e-02 : f32
      %17 = vector.broadcast %cst_19 : f32 to vector<2x32xf32>
      %18 = arith.mulf %16, %17 : vector<2x32xf32>
      %c0_20 = arith.constant 0 : index
      %c0_21 = arith.constant 0 : index
      %19 = vector.load %arg7[%c0_20, %c0_21] : memref<2x32xf32, #tpu.memory_space<vmem>>, vector<2x32xf32>
      %c0_22 = arith.constant 0 : index
      %c0_23 = arith.constant 0 : index
      %c0_24 = arith.constant 0 : index
      %20 = vector.load %arg3[%c0_22, %c0_23, %c0_24] : memref<2x32x4xf32, #tpu.memory_space<vmem>>, vector<1x32x4xf32>
      %21 = vector.shape_cast %20 : vector<1x32x4xf32> to vector<32x4xf32>
      %cst_25 = arith.constant dense<0.000000e+00> : vector<2x4xf32>
      %22 = tpu.matmul %18, %21, %cst_25 {dimension_numbers = #tpu.dot_dimension_numbers<[1], [0], [0], [1], [0, 0, 1, 1], [], []>} : vector<2x32xf32>, vector<32x4xf32>, vector<2x4xf32> -> vector<2x4xf32>
      %c1 = arith.constant 1 : index
      %c0_26 = arith.constant 0 : index
      %c0_27 = arith.constant 0 : index
      %23 = vector.load %arg3[%c1, %c0_26, %c0_27] : memref<2x32x4xf32, #tpu.memory_space<vmem>>, vector<1x32x4xf32>
      %24 = vector.shape_cast %23 : vector<1x32x4xf32> to vector<32x4xf32>
      %cst_28 = arith.constant dense<0.000000e+00> : vector<2x4xf32>
      %25 = tpu.matmul %19, %24, %cst_28 {dimension_numbers = #tpu.dot_dimension_numbers<[1], [0], [0], [1], [0, 0, 1, 1], [], []>} : vector<2x32xf32>, vector<32x4xf32>, vector<2x4xf32> -> vector<2x4xf32>
      %26 = arith.addf %22, %25 : vector<2x4xf32>
      %c0_29 = arith.constant 0 : index
      %c0_30 = arith.constant 0 : index
      %27 = vector.load %arg4[%c0_29, %c0_30] : memref<1x4xf32, #tpu.memory_space<vmem>>, vector<1x4xf32>
      %28 = vector.broadcast %27 : vector<1x4xf32> to vector<2x4xf32>
      %29 = arith.addf %26, %28 : vector<2x4xf32>
      %cst_31 = arith.constant dense<0xFF800000> : vector<2xf32>
      %30 = vector.multi_reduction <maximumf>, %29, %cst_31 [1] : vector<2x4xf32> to vector<2xf32>
      %31 = vector.shape_cast %30 : vector<2xf32> to vector<2x1xf32>
      %32 = vector.broadcast %31 : vector<2x1xf32> to vector<2x4xf32>
      %33 = arith.subf %29, %32 : vector<2x4xf32>
      %34 = math.exp %33 : vector<2x4xf32>
      %cst_32 = arith.constant dense<0.000000e+00> : vector<2xf32>
      %35 = vector.multi_reduction <add>, %34, %cst_32 [1] : vector<2x4xf32> to vector<2xf32>
      %36 = vector.shape_cast %35 : vector<2xf32> to vector<2x1xf32>
      %37 = vector.broadcast %36 : vector<2x1xf32> to vector<2x4xf32>
      %38 = arith.divf %34, %37 : vector<2x4xf32>
      %c0_33 = arith.constant 0 : index
      %c0_34 = arith.constant 0 : index
      %39 = vector.load %arg5[%c0_33, %c0_34] : memref<2x4xf32, #tpu.memory_space<vmem>>, vector<2x4xf32>
      tpu.vector_store %arg5[%c0_33, %c0_34], %38 {strides = array<i32>} : memref<2x4xf32, #tpu.memory_space<vmem>>, vector<2x4xf32>,
    } else {
    }
    return
  }
  func.func @transform_0(%arg0: i32, %arg1: i32) -> (i32, i32, i32) {
    %c0_i32 = arith.constant 0 : i32
    %c0_i32_0 = arith.constant 0 : i32
    return %arg0, %arg1, %c0_i32 : i32, i32, i32
  }
  func.func @transform_1(%arg0: i32, %arg1: i32) -> (i32, i32, i32) {
    %c0_i32 = arith.constant 0 : i32
    %c0_i32_0 = arith.constant 0 : i32
    %c0_i32_1 = arith.constant 0 : i32
    %c0_i32_2 = arith.constant 0 : i32
    return %c0_i32, %c0_i32_0, %c0_i32_1 : i32, i32, i32
  }
  func.func @transform_2(%arg0: i32, %arg1: i32) -> (i32, i32) {
    %c0_i32 = arith.constant 0 : i32
    %c0_i32_0 = arith.constant 0 : i32
    %c0_i32_1 = arith.constant 0 : i32
    return %c0_i32, %c0_i32_0 : i32, i32
  }
  func.func @transform_3(%arg0: i32, %arg1: i32) -> (i32, i32) {
    %c0_i32 = arith.constant 0 : i32
    %c0_i32_0 = arith.constant 0 : i32
    return %arg0, %c0_i32 : i32, i32
  }
}

</mosaic_0001>

<llo_original>
// kernel: tpu_custom_call.1
$region0: #{tpu_custom_call.1}
  #allocation0 [shape = 'u32[]', space=smem, size = 0x4, offset = 0x4, fixed_abs, tag = 'smem constant byte address 0x4 - core index']
  #allocation1 [shape = 'u32[144,128]{1,0:T(1,128)}', space=vmem, size = 0x12000, scoped, tag = 'internal scratch']
  #allocation2 [shape = 'f32[2,32]{1,0:T(2,128)}', space=vmem, size = 0x400, scoped, tag = 'scratch operand']
  #allocation3 [shape = 'f32[2,32]{1,0:T(2,128)}', space=vmem, size = 0x400, scoped, tag = 'scratch operand']
  %s0 = inlined_call_operand.vmem [shape: f32[2,16,32], index: 0, kind: input, shape index: {}]
  %s1 = inlined_call_operand.vmem [shape: f32[2,32,4], index: 1, kind: input, shape index: {}]
  %s2 = inlined_call_operand.vmem [shape: f32[1,4], index: 2, kind: input, shape index: {}]
  %s3 = inlined_call_operand.hbm [shape: f32[2,4], index: 3, kind: output, shape index: {}]
  %s4 = sld [smem:[#allocation0]]
  $region30: #{tpu_custom_call.1} parent=0
    _
  %s6 = ssub.s32 1, %s4
  %s7 = scalar_select 0, %s6, %s4
  $region1: #{tpu_custom_call.1} parent=0
    #allocation4 [shape = 'u8[1024]{0}', space=vmem, size = 0x400, scoped, tag = 'output window, operand 0, single buffered']
    #allocation5 [shape = 's32[1]{0}', space=sflag, size = 0x4, scoped, tag = 'scoped memory for tpu_custom_call.1']
    %8 = vsyncpa [#allocation5], 0
    // Predicated region
    $region2: #{tpu_custom_call.1} parent=1 // pred_check
      _
    $region3: #{tpu_custom_call.1} parent=1 // pred_check_branch
      %10 = sbr.rel (0) target = $region5
    $region4: #{tpu_custom_call.1} parent=1 // pred_region
      _
    $region5: #{tpu_custom_call.1} parent=1 // pred_fallthru
      _
    // Predicated region
    $region6: #{tpu_custom_call.1} parent=1 // pred_check
      _
    $region7: #{tpu_custom_call.1} parent=1 // pred_check_branch
      %12 = sbr.rel (0) target = $region9
    $region8: #{tpu_custom_call.1} parent=1 // pred_region
      _
    $region9: #{tpu_custom_call.1} parent=1 // pred_fallthru
      _
    // Predicated region
    $region10: #{tpu_custom_call.1} parent=1 // pred_check
      _
    $region11: #{tpu_custom_call.1} parent=1 // pred_check_branch
      %14 = sbr.rel (0) target = $region13
    $region12: #{tpu_custom_call.1} parent=1 // pred_region
      _
    $region13: #{tpu_custom_call.1} parent=1 // pred_fallthru
      _
    %p15 = scmp.eq.s32.totalorder 0, 0
    // Predicated region
    $region14: #{tpu_custom_call.1} parent=1 // pred_check
      %p16 = pneg %p15
    $region15: #{tpu_custom_call.1} parent=1 // pred_check_branch
      %18 = sbr.rel (%p16) target = $region17
    $region16: #{tpu_custom_call.1} parent=1 // pred_region
      %vm19 = vcmask 254976
      %20 = vst.msk [vmem:[#allocation2] sm:$0x3] %vm19, 0.0
      %21 = vst.msk [vmem:[#allocation3] sm:$0x3] %vm19, -inf
    $region17: #{tpu_custom_call.1} parent=1 // pred_fallthru
      _
    %v22 = vld [vmem:[#allocation2] sm:$0x3]
    %v23 = vld [vmem:[%s0] sm:$0xff]
    %v24 = vld [vmem:[%s0 + $0x8] sm:$0xff]
    %v25 = vld [vmem:[%s0 + $0x10] sm:$0xff]
    %v26 = vld [vmem:[%s0 + $0x18] sm:$0xff]
    %vm27 = vcmask 261120
    %v28 = vsel %vm27, %v23, 0.0
    %v29 = vsel %vm27, %v24, 0.0
    %v30 = vadd.f32 %v28, %v29
    %v31 = vrot.slane %v30, 4
    %v32 = vadd.f32 %v30, %v31
    %v33 = vrot.slane %v32, 2
    %v34 = vadd.f32 %v32, %v33
    %v35 = vrot.slane %v34, 1
    %v36 = vadd.f32 %v34, %v35
    %v37 = vsel %vm27, %v25, 0.0
    %v38 = vsel %vm27, %v26, 0.0
    %v39 = vadd.f32 %v37, %v38
    %v40 = vrot.slane %v39, 4
    %v41 = vadd.f32 %v39, %v40
    %v42 = vrot.slane %v41, 2
    %v43 = vadd.f32 %v41, %v42
    %v44 = vrot.slane %v43, 1
    %v45 = vadd.f32 %v43, %v44
    %vm48 = vcmask 1041409
    %v49 = vsel %vm48, %v45, %v36
    %v51 = vadd.f32 %v22, %v49
    %vm52 = vcmask 254976
    %53 = vst.msk [vmem:[#allocation2] sm:$0x3] %vm52, %v51
    %v54 = vld [vmem:[%s0] sm:$0xff]
    %v55 = vld [vmem:[%s0 + $0x8] sm:$0xff]
    %v56 = vld [vmem:[%s0 + $0x10] sm:$0xff]
    %v57 = vld [vmem:[%s0 + $0x18] sm:$0xff]
    %v58 = vld [vmem:[#allocation3] sm:$0x3]
    %v59 = vsel %vm27, %v54, -inf
    %v60 = vsel %vm27, %v55, -inf
    %v61 = vmax.f32 %v59, %v60
    %v62 = vrot.slane %v61, 4
    %v63 = vmax.f32 %v61, %v62
    %v64 = vrot.slane %v63, 2
    %v65 = vmax.f32 %v63, %v64
    %v66 = vrot.slane %v65, 1
    %v67 = vmax.f32 %v65, %v66
    %v68 = vsel %vm27, %v56, -inf
    %v69 = vsel %vm27, %v57, -inf
    %v70 = vmax.f32 %v68, %v69
    %v71 = vrot.slane %v70, 4
    %v72 = vmax.f32 %v70, %v71
    %v73 = vrot.slane %v72, 2
    %v74 = vmax.f32 %v72, %v73
    %v75 = vrot.slane %v74, 1
    %v76 = vmax.f32 %v74, %v75
    %v79 = vsel %vm48, %v76, %v67
    %v81 = vmax.f32 %v58, %v79
    %82 = vst.msk [vmem:[#allocation3] sm:$0x3] %vm52, %v81
    // Predicated region
    $region18: #{tpu_custom_call.1} parent=1 // pred_check
      %p83 = pneg %p15
    $region19: #{tpu_custom_call.1} parent=1 // pred_check_branch
      %85 = sbr.rel (%p83) target = $region21
    $region20: #{tpu_custom_call.1} parent=1 // pred_region
      %v86 = vld [vmem:[#allocation2] sm:$0x3]
      %v87 = vmul.f32 %v86, 0.0625
      %v88 = vld [vmem:[#allocation3] sm:$0x3]
      %v89 = vld [vmem:[%s1] sm:$0xff]
      %v90 = vld [vmem:[%s1 + $0x8] sm:$0xff]
      %v91 = vld [vmem:[%s1 + $0x10] sm:$0xff]
      %v92 = vld [vmem:[%s1 + $0x18] sm:$0xff]
      %s93 = scalar_lea.vmem %s1, 32
      %v94 = vld [vmem:[%s93] sm:$0xff]
      %v95 = vld [vmem:[%s93 + $0x8] sm:$0xff]
      %v96 = vld [vmem:[%s93 + $0x10] sm:$0xff]
      %v97 = vld [vmem:[%s93 + $0x18] sm:$0xff]
      %v99 = vsel %vm27, %v88, 0
      %101 = vmatprep.subr.mxu0 0.0
      %102 = vmatpush1.msra.mxu0 %v94
      %103 = vmatprep.subr.mxu0 0.0
      %104 = vmatpush1.msra.mxu0 %v95
      %105 = vmatprep.subr.mxu0 0.0
      %106 = vmatpush1.msra.mxu0 %v96
      %107 = vmatprep.subr.mxu0 0.0
      %108 = vmatpush1.msra.mxu0 %v97
      %109 = vmatprep.subr.mxu0 0.0
      %110 = vmatpush1.msra.mxu0 0.0
      %111 = vmatprep.subr.mxu0 0.0
      %112 = vmatpush1.msra.mxu0 0.0
      %113 = vmatprep.subr.mxu0 0.0
      %114 = vmatpush1.msra.mxu0 0.0
      %115 = vmatprep.subr.mxu0 0.0
      %116 = vmatpush1.msra.mxu0 0.0
      %117 = vmatprep.subr.mxu0 0.0
      %118 = vmatpush1.msra.mxu0 0.0
      %119 = vmatprep.subr.mxu0 0.0
      %120 = vmatpush1.msra.mxu0 0.0
      %121 = vmatprep.subr.mxu0 0.0
      %122 = vmatpush1.msra.mxu0 0.0
      %123 = vmatprep.subr.mxu0 0.0
      %124 = vmatpush1.msra.mxu0 0.0
      %125 = vmatprep.subr.mxu0 0.0
      %126 = vmatpush1.msra.mxu0 0.0
      %127 = vmatprep.subr.mxu0 0.0
      %128 = vmatpush1.msra.mxu0 0.0
      %129 = vmatprep.subr.mxu0 0.0
      %130 = vmatpush1.msra.mxu0 0.0
      %131 = vmatprep.subr.mxu0 0.0
      %132 = vmatpush1.msra.mxu0 0.0
      %133 = vmatprep.subr.mxu0 0.0
      %134 = vmatpush1.msra.mxu0 0.0
      %135 = vmatprep.subr.mxu0 0.0
      %136 = vmatpush1.msra.mxu0 0.0
      %137 = vmatprep.subr.mxu0 0.0
      %138 = vmatpush1.msra.mxu0 0.0
      %139 = vmatprep.subr.mxu0 0.0
      %140 = vmatpush1.msra.mxu0 0.0
      %141 = vmatprep.subr.mxu0 0.0
      %142 = vmatpush1.msra.mxu0 0.0
      %143 = vmatprep.subr.mxu0 0.0
      %144 = vmatpush1.msra.mxu0 0.0
      %145 = vmatprep.subr.mxu0 0.0
      %146 = vmatpush1.msra.mxu0 0.0
      %147 = vmatprep.subr.mxu0 0.0
      %148 = vmatpush1.msra.mxu0 0.0
      %149 = vmatprep.subr.mxu0 0.0
      %150 = vmatpush1.msra.mxu0 0.0
      %151 = vmatprep.subr.mxu0 0.0
      %152 = vmatpush1.msra.mxu0 0.0
      %153 = vmatprep.subr.mxu0 0.0
      %154 = vmatpush1.msra.mxu0 0.0
      %155 = vmatprep.subr.mxu0 0.0
      %156 = vmatpush1.msra.mxu0 0.0
      %157 = vmatprep.subr.mxu0 0.0
      %158 = vmatpush1.msra.mxu0 0.0
      %159 = vmatprep.subr.mxu0 0.0
      %160 = vmatpush1.msra.mxu0 0.0
      %161 = vmatprep.subr.mxu0 0.0
      %162 = vmatpush1.msra.mxu0 0.0
      %163 = vmatprep.subr.mxu0 0.0
      %164 = vmatpush1.msra.mxu0 0.0
      %165 = vmatprep.mubr.f32.mxu0 0.0
      %166 = vmatmul.mubr.f32.gmra.mrb[0].mxu0 %v99
      %v167 = vpop.f32.mrb[0].mxu0
      %v168 = vadd.f32 0.0, %v167
      %v169 = vpop.f32.mrb[0].mxu0
      %170 = vdwg.mxu0
      %v172 = vsel %vm27, %v87, 0
      %174 = vmatprep.subr.mxu0 0.0
      %175 = vmatpush1.msra.mxu0 %v89
      %176 = vmatprep.subr.mxu0 0.0
      %177 = vmatpush1.msra.mxu0 %v90
      %178 = vmatprep.subr.mxu0 0.0
      %179 = vmatpush1.msra.mxu0 %v91
      %180 = vmatprep.subr.mxu0 0.0
      %181 = vmatpush1.msra.mxu0 %v92
      %182 = vmatprep.subr.mxu0 0.0
      %183 = vmatpush1.msra.mxu0 0.0
      %184 = vmatprep.subr.mxu0 0.0
      %185 = vmatpush1.msra.mxu0 0.0
      %186 = vmatprep.subr.mxu0 0.0
      %187 = vmatpush1.msra.mxu0 0.0
      %188 = vmatprep.subr.mxu0 0.0
      %189 = vmatpush1.msra.mxu0 0.0
      %190 = vmatprep.subr.mxu0 0.0
      %191 = vmatpush1.msra.mxu0 0.0
      %192 = vmatprep.subr.mxu0 0.0
      %193 = vmatpush1.msra.mxu0 0.0
      %194 = vmatprep.subr.mxu0 0.0
      %195 = vmatpush1.msra.mxu0 0.0
      %196 = vmatprep.subr.mxu0 0.0
      %197 = vmatpush1.msra.mxu0 0.0
      %198 = vmatprep.subr.mxu0 0.0
      %199 = vmatpush1.msra.mxu0 0.0
      %200 = vmatprep.subr.mxu0 0.0
      %201 = vmatpush1.msra.mxu0 0.0
      %202 = vmatprep.subr.mxu0 0.0
      %203 = vmatpush1.msra.mxu0 0.0
      %204 = vmatprep.subr.mxu0 0.0
      %205 = vmatpush1.msra.mxu0 0.0
      %206 = vmatprep.subr.mxu0 0.0
      %207 = vmatpush1.msra.mxu0 0.0
      %208 = vmatprep.subr.mxu0 0.0
      %209 = vmatpush1.msra.mxu0 0.0
      %210 = vmatprep.subr.mxu0 0.0
      %211 = vmatpush1.msra.mxu0 0.0
      %212 = vmatprep.subr.mxu0 0.0
      %213 = vmatpush1.msra.mxu0 0.0
      %214 = vmatprep.subr.mxu0 0.0
      %215 = vmatpush1.msra.mxu0 0.0
      %216 = vmatprep.subr.mxu0 0.0
      %217 = vmatpush1.msra.mxu0 0.0
      %218 = vmatprep.subr.mxu0 0.0
      %219 = vmatpush1.msra.mxu0 0.0
      %220 = vmatprep.subr.mxu0 0.0
      %221 = vmatpush1.msra.mxu0 0.0
      %222 = vmatprep.subr.mxu0 0.0
      %223 = vmatpush1.msra.mxu0 0.0
      %224 = vmatprep.subr.mxu0 0.0
      %225 = vmatpush1.msra.mxu0 0.0
      %226 = vmatprep.subr.mxu0 0.0
      %227 = vmatpush1.msra.mxu0 0.0
      %228 = vmatprep.subr.mxu0 0.0
      %229 = vmatpush1.msra.mxu0 0.0
      %230 = vmatprep.subr.mxu0 0.0
      %231 = vmatpush1.msra.mxu0 0.0
      %232 = vmatprep.subr.mxu0 0.0
      %233 = vmatpush1.msra.mxu0 0.0
      %234 = vmatprep.subr.mxu0 0.0
      %235 = vmatpush1.msra.mxu0 0.0
      %236 = vmatprep.subr.mxu0 0.0
      %237 = vmatpush1.msra.mxu0 0.0
      %238 = vmatprep.mubr.f32.mxu0 0.0
      %239 = vmatmul.mubr.f32.gmra.mrb[0].mxu0 %v172
      %v240 = vpop.f32.mrb[0].mxu0
      %v241 = vadd.f32 %v168, %v240
      %v242 = vpop.f32.mrb[0].mxu0
      %243 = vdwg.mxu0
      %v244 = vld [vmem:[%s2] sm:$0x1]
      %v246 = vlaneseq
      %v247 = vshrl.u32 %v246, 7
      %v248 = vsub.s32 0, %v247
      %v249 = vrot.slane %v244, %v248
      %v251 = vadd.f32 %v241, %v249
      %vm252 = vcmask 25600
      %v253 = vsel %vm252, %v251, -inf
      %254 = vmax.xlane.f32.xlu0 %v253
      %v255 = vpop.xlane.xlu0 %254
      %v256 = vsub.f32 %v251, %v255
      %v257 = vmul.f32 %v256, 1.442695
      %v258 = vpow.pop %v257
      %v259 = vsel %vm252, %v258, 0.0
      %260 = vadd.xlane.f32.xlu0 %v259
      %v261 = vpop.xlane.xlu0 %260
      %v262 = vrcp.pop %v261
      %v263 = vmul.f32 %v258, %v262
      %264 = vst.msk [vmem:[#allocation4] sm:$0x3] %vm252, %v263
    $region21: #{tpu_custom_call.1} parent=1 // pred_fallthru
      _
    // Predicated region
    $region22: #{tpu_custom_call.1} parent=1 // pred_check
      _
    $region23: #{tpu_custom_call.1} parent=1 // pred_check_branch
      %266 = sbr.rel (0) target = $region25
    $region24: #{tpu_custom_call.1} parent=1 // pred_region
      %s268 = ssub.s32 32, 32
      %269 = vsyncadd [#allocation5], %s268
      %s271 = sshll.u32 [#allocation4], 4
      %s272 = int_to_ptr.vmem [resolvable:$true] %s271
      %274 = dma.vmem_to_hbm [thread:$0]  %s272, 32, %s3, [#allocation5]
    $region25: #{tpu_custom_call.1} parent=1 // pred_fallthru
      _
    // Predicated region
    $region26: #{tpu_custom_call.1} parent=1 // pred_check
      _
    $region27: #{tpu_custom_call.1} parent=1 // pred_check_branch
      %276 = sbr.rel (0) target = $region29
    $region28: #{tpu_custom_call.1} parent=1 // pred_region
      %277 = dma.done [#allocation5], 32
    $region29: #{tpu_custom_call.1} parent=1 // pred_fallthru
      _
    %278 = vsyncpa [#allocation5], 1

</llo_original>
